<compile_context>
chip_gen: v6e
topology: v6e:2x2x1
jax: 0.10.0
libtpu: 0.0.40
codegen_flags: <defaults>
</compile_context>

<pallas_src>
import jax
import jax.numpy as jnp
import numpy as np
from jax.experimental import pallas as pl
from jax.experimental.pallas import tpu as pltpu

IN_F = 2
H0 = 64        # linear   : 2   -> 64
H1, H1P = 100, 128   # linear1 : 64  -> 100 (padded to 128)
H2, H2P = 400, 512   # linear2 : 100 -> 400 (padded to 512)
OUT_F = 9      # linear3 : 400 -> 9


def _round_up(n, m):
    return ((n + m - 1) // m) * m


def mlp_kernel(x_ref, w0_ref, b0_ref, w1_ref, b1_ref,
               w2_ref, b2_ref, w3_ref, b3_ref, o_ref):
    x = x_ref[...]                                       # (TB, 2) f32

    # softmax over last dim (width 2); approx reciprocal goes to the EUP slot.
    m = jnp.max(x, axis=-1, keepdims=True)
    e = jnp.exp(x - m)
    sm = e * pl.reciprocal(jnp.sum(e, axis=-1, keepdims=True), approx=True)

    # linear (2 -> 64) + relu.  K=2 contraction wastes an MXU pass, so do it
    # on the VPU: two broadcast multiply-adds (outer-product style).
    w0 = w0_ref[...]                                     # (2, 64) f32
    h0 = (sm[:, 0:1] * w0[0:1, :]
          + sm[:, 1:2] * w0[1:2, :]
          + b0_ref[...])
    h0 = jnp.maximum(h0, 0.0)

    # linear1 (64 -> 128 padded): bf16 MXU operands, f32 accumulation.
    h1 = jnp.dot(h0.astype(jnp.bfloat16), w1_ref[...],
                 preferred_element_type=jnp.float32) + b1_ref[...]
    # TODO(synk): dropout(p=0.1) is identity in inference mode; training-mode RNG dropout not implemented.

    # tanh (f32 on VPU/EUP) -> linear2 (128 -> 512 padded) + relu.
    t = jnp.tanh(h1)
    h2 = jnp.dot(t.astype(jnp.bfloat16), w2_ref[...],
                 preferred_element_type=jnp.float32) + b2_ref[...]
    h2 = jnp.maximum(h2, 0.0)

    # linear3 (512 padded -> 9).
    out = jnp.dot(h2.astype(jnp.bfloat16), w3_ref[...],
                  preferred_element_type=jnp.float32) + b3_ref[...]
    o_ref[...] = out.astype(o_ref.dtype)


def prepare_params(params):
    """Zero-pad hidden dims to MXU/lane-aligned sizes and cast MXU weights to bf16."""
    w0, b0, w1, b1, w2, b2, w3, b3 = params
    w1p = jnp.zeros((H0, H1P), jnp.float32).at[:, :H1].set(w1).astype(jnp.bfloat16)
    b1p = jnp.zeros((1, H1P), jnp.float32).at[:, :H1].set(b1)
    w2p = jnp.zeros((H1P, H2P), jnp.float32).at[:H1, :H2].set(w2).astype(jnp.bfloat16)
    b2p = jnp.zeros((1, H2P), jnp.float32).at[:, :H2].set(b2)
    w3p = jnp.zeros((H2P, OUT_F), jnp.float32).at[:H2, :].set(w3).astype(jnp.bfloat16)
    return (w0, b0, w1p, b1p, w2p, b2p, w3p, b3)


def mlp_forward(x, prepped, tile_b=512):
    """x: (B, 2) f32.  Batch-gridded pallas_call; weights stay VMEM-resident."""
    w0, b0, w1, b1, w2, b2, w3, b3 = prepped
    B = x.shape[0]
    tb = min(tile_b, _round_up(B, 8))          # tile must be a multiple of 8 sublanes
    B_pad = _round_up(B, tb)
    if B_pad != B:
        x = jnp.pad(x, ((0, B_pad - B), (0, 0)))

    const2 = lambda i: (0, 0)
    out = pl.pallas_call(
        mlp_kernel,
        out_shape=jax.ShapeDtypeStruct((B_pad, OUT_F), jnp.float32),
        grid=(B_pad // tb,),
        in_specs=[
            pl.BlockSpec((tb, IN_F), lambda i: (i, 0)),    # x streams/double-buffers
            pl.BlockSpec((IN_F, H0), const2),              # weights: DMA'd once, resident
            pl.BlockSpec((1, H0), const2),
            pl.BlockSpec((H0, H1P), const2),
            pl.BlockSpec((1, H1P), const2),
            pl.BlockSpec((H1P, H2P), const2),
            pl.BlockSpec((1, H2P), const2),
            pl.BlockSpec((H2P, OUT_F), const2),
            pl.BlockSpec((1, OUT_F), const2),
        ],
        out_specs=pl.BlockSpec((tb, OUT_F), lambda i: (i, 0)),
        compiler_params=pltpu.CompilerParams(
            dimension_semantics=("parallel",),             # shard batch across TCs (v7x)
            vmem_limit_bytes=64 << 20,
        ),
    )(x, w0, b0, w1, b1, w2, b2, w3, b3)
    return out[:B]


def mlp_reference(x, params):
    """Pure-JAX f32 reference matching the PyTorch module (eval mode)."""
    w0, b0, w1, b1, w2, b2, w3, b3 = params
    sm = jax.nn.softmax(x, axis=-1)
    h0 = jnp.maximum(sm @ w0 + b0, 0.0)
    h1 = h0 @ w1 + b1                    # dropout is identity in eval mode
    h2 = jnp.maximum(jnp.tanh(h1) @ w2 + b2, 0.0)
    return h2 @ w3 + b3


def init_params(key):
    # Deterministic init mimicking torch.nn.Linear (uniform(-1/sqrt(fan_in), 1/sqrt(fan_in))).
    dims = [(IN_F, H0), (H0, H1), (H1, H2), (H2, OUT_F)]
    params = []
    for (fan_in, fan_out) in dims:
        key, kw, kb = jax.random.split(key, 3)
        bound = 1.0 / (fan_in ** 0.5)
        w = jax.random.uniform(kw, (fan_in, fan_out), jnp.float32, -bound, bound)
        b = jax.random.uniform(kb, (1, fan_out), jnp.float32, -bound, bound)
        params += [w, b]
    return tuple(params)


if __name__ == "__main__":
    key = jax.random.PRNGKey(0)
    key, kx = jax.random.split(key)
    # The module's first Linear has in_features=2, so inputs must be (batch, 2).
    x = jax.random.uniform(kx, (8, IN_F), jnp.float32)
    params = init_params(key)
    prepped = prepare_params(params)

    out = mlp_forward(x, prepped)
    jax.block_until_ready(out)
    assert out.shape == (8, OUT_F) and out.dtype == jnp.float32

    ref = mlp_reference(x, params)
    np.testing.assert_allclose(np.asarray(out), np.asarray(ref), rtol=5e-2, atol=5e-2)
    print("KERNEL_OK")
</pallas_src>

<mosaic_0001>
module attributes {stable_mosaic.version = 11 : i64} {
  func.func @mlp_kernel(%arg0: i32, %arg1: memref<8x2xf32, #tpu.memory_space<vmem>>, %arg2: memref<2x64xf32, #tpu.memory_space<vmem>>, %arg3: memref<1x64xf32, #tpu.memory_space<vmem>>, %arg4: memref<64x128xbf16, #tpu.memory_space<vmem>>, %arg5: memref<1x128xf32, #tpu.memory_space<vmem>>, %arg6: memref<128x512xbf16, #tpu.memory_space<vmem>>, %arg7: memref<1x512xf32, #tpu.memory_space<vmem>>, %arg8: memref<512x9xbf16, #tpu.memory_space<vmem>>, %arg9: memref<1x9xf32, #tpu.memory_space<vmem>>, %arg10: memref<8x9xf32, #tpu.memory_space<vmem>>) attributes {dimension_semantics = [#tpu.dimension_semantics<parallel>], iteration_bounds = array<i64: 1>, scalar_prefetch = 0 : i64, scratch_operands = 0 : i64, tpu.core_type = #tpu.core_type<tc>, window_params = [{transform_indices = @transform_0, window_bounds = array<i64: 8, 2>}, {pipeline_mode = #tpu.pipeline_mode<synchronous>, transform_indices = @transform_1, window_bounds = array<i64: 2, 64>}, {pipeline_mode = #tpu.pipeline_mode<synchronous>, transform_indices = @transform_2, window_bounds = array<i64: 1, 64>}, {pipeline_mode = #tpu.pipeline_mode<synchronous>, transform_indices = @transform_3, window_bounds = array<i64: 64, 128>}, {pipeline_mode = #tpu.pipeline_mode<synchronous>, transform_indices = @transform_4, window_bounds = array<i64: 1, 128>}, {pipeline_mode = #tpu.pipeline_mode<synchronous>, transform_indices = @transform_5, window_bounds = array<i64: 128, 512>}, {pipeline_mode = #tpu.pipeline_mode<synchronous>, transform_indices = @transform_6, window_bounds = array<i64: 1, 512>}, {pipeline_mode = #tpu.pipeline_mode<synchronous>, transform_indices = @transform_7, window_bounds = array<i64: 512, 9>}, {pipeline_mode = #tpu.pipeline_mode<synchronous>, transform_indices = @transform_8, window_bounds = array<i64: 1, 9>}, {transform_indices = @transform_9, window_bounds = array<i64: 8, 9>}]} {
    %c0 = arith.constant 0 : index
    %c0_0 = arith.constant 0 : index
    %0 = vector.load %arg1[%c0, %c0_0] : memref<8x2xf32, #tpu.memory_space<vmem>>, vector<8x2xf32>
    %cst = arith.constant dense<0xFF800000> : vector<8xf32>
    %1 = vector.multi_reduction <maximumf>, %0, %cst [1] : vector<8x2xf32> to vector<8xf32>
    %2 = vector.shape_cast %1 : vector<8xf32> to vector<8x1xf32>
    %3 = vector.broadcast %2 : vector<8x1xf32> to vector<8x2xf32>
    %4 = arith.subf %0, %3 : vector<8x2xf32>
    %5 = math.exp %4 : vector<8x2xf32>
    %cst_1 = arith.constant dense<0.000000e+00> : vector<8xf32>
    %6 = vector.multi_reduction <add>, %5, %cst_1 [1] : vector<8x2xf32> to vector<8xf32>
    %7 = vector.shape_cast %6 : vector<8xf32> to vector<8x1xf32>
    %8 = tpu.reciprocal %7 {approx = true} : vector<8x1xf32> -> vector<8x1xf32>
    %9 = vector.broadcast %8 : vector<8x1xf32> to vector<8x2xf32>
    %10 = arith.mulf %5, %9 : vector<8x2xf32>
    %c0_2 = arith.constant 0 : index
    %c0_3 = arith.constant 0 : index
    %11 = vector.load %arg2[%c0_2, %c0_3] : memref<2x64xf32, #tpu.memory_space<vmem>>, vector<2x64xf32>
    %12 = vector.extract_strided_slice %10 {offsets = [0, 0], sizes = [8, 1], strides = [1, 1]} : vector<8x2xf32> to vector<8x1xf32>
    %13 = vector.extract_strided_slice %11 {offsets = [0, 0], sizes = [1, 64], strides = [1, 1]} : vector<2x64xf32> to vector<1x64xf32>
    %14 = vector.broadcast %12 : vector<8x1xf32> to vector<8x64xf32>
    %15 = vector.broadcast %13 : vector<1x64xf32> to vector<8x64xf32>
    %16 = arith.mulf %14, %15 : vector<8x64xf32>
    %17 = vector.extract_strided_slice %10 {offsets = [0, 1], sizes = [8, 1], strides = [1, 1]} : vector<8x2xf32> to vector<8x1xf32>
    %18 = vector.extract_strided_slice %11 {offsets = [1, 0], sizes = [1, 64], strides = [1, 1]} : vector<2x64xf32> to vector<1x64xf32>
    %19 = vector.broadcast %17 : vector<8x1xf32> to vector<8x64xf32>
    %20 = vector.broadcast %18 : vector<1x64xf32> to vector<8x64xf32>
    %21 = arith.mulf %19, %20 : vector<8x64xf32>
    %22 = arith.addf %16, %21 : vector<8x64xf32>
    %c0_4 = arith.constant 0 : index
    %c0_5 = arith.constant 0 : index
    %23 = vector.load %arg3[%c0_4, %c0_5] : memref<1x64xf32, #tpu.memory_space<vmem>>, vector<1x64xf32>
    %24 = vector.broadcast %23 : vector<1x64xf32> to vector<8x64xf32>
    %25 = arith.addf %22, %24 : vector<8x64xf32>
    %cst_6 = arith.constant 0.000000e+00 : f32
    %26 = vector.broadcast %cst_6 : f32 to vector<8x64xf32>
    %27 = arith.maximumf %25, %26 : vector<8x64xf32>
    %28 = arith.truncf %27 : vector<8x64xf32> to vector<8x64xbf16>
    %c0_7 = arith.constant 0 : index
    %c0_8 = arith.constant 0 : index
    %29 = vector.load %arg4[%c0_7, %c0_8] : memref<64x128xbf16, #tpu.memory_space<vmem>>, vector<64x128xbf16>
    %cst_9 = arith.constant dense<0.000000e+00> : vector<8x128xf32>
    %30 = tpu.matmul %28, %29, %cst_9 {dimension_numbers = #tpu.dot_dimension_numbers<[1], [0], [0], [1], [0, 0, 1, 1], [], []>} : vector<8x64xbf16>, vector<64x128xbf16>, vector<8x128xf32> -> vector<8x128xf32>
    %c0_10 = arith.constant 0 : index
    %c0_11 = arith.constant 0 : index
    %31 = vector.load %arg5[%c0_10, %c0_11] : memref<1x128xf32, #tpu.memory_space<vmem>>, vector<1x128xf32>
    %32 = vector.broadcast %31 : vector<1x128xf32> to vector<8x128xf32>
    %33 = arith.addf %30, %32 : vector<8x128xf32>
    %34 = math.tanh %33 : vector<8x128xf32>
    %35 = arith.truncf %34 : vector<8x128xf32> to vector<8x128xbf16>
    %c0_12 = arith.constant 0 : index
    %c0_13 = arith.constant 0 : index
    %36 = vector.load %arg6[%c0_12, %c0_13] : memref<128x512xbf16, #tpu.memory_space<vmem>>, vector<128x512xbf16>
    %cst_14 = arith.constant dense<0.000000e+00> : vector<8x512xf32>
    %37 = tpu.matmul %35, %36, %cst_14 {dimension_numbers = #tpu.dot_dimension_numbers<[1], [0], [0], [1], [0, 0, 1, 1], [], []>} : vector<8x128xbf16>, vector<128x512xbf16>, vector<8x512xf32> -> vector<8x512xf32>
    %c0_15 = arith.constant 0 : index
    %c0_16 = arith.constant 0 : index
    %38 = vector.load %arg7[%c0_15, %c0_16] : memref<1x512xf32, #tpu.memory_space<vmem>>, vector<1x512xf32>
    %39 = vector.broadcast %38 : vector<1x512xf32> to vector<8x512xf32>
    %40 = arith.addf %37, %39 : vector<8x512xf32>
    %cst_17 = arith.constant 0.000000e+00 : f32
    %41 = vector.broadcast %cst_17 : f32 to vector<8x512xf32>
    %42 = arith.maximumf %40, %41 : vector<8x512xf32>
    %43 = arith.truncf %42 : vector<8x512xf32> to vector<8x512xbf16>
    %c0_18 = arith.constant 0 : index
    %c0_19 = arith.constant 0 : index
    %44 = vector.load %arg8[%c0_18, %c0_19] : memref<512x9xbf16, #tpu.memory_space<vmem>>, vector<512x9xbf16>
    %cst_20 = arith.constant dense<0.000000e+00> : vector<8x9xf32>
    %45 = tpu.matmul %43, %44, %cst_20 {dimension_numbers = #tpu.dot_dimension_numbers<[1], [0], [0], [1], [0, 0, 1, 1], [], []>} : vector<8x512xbf16>, vector<512x9xbf16>, vector<8x9xf32> -> vector<8x9xf32>
    %c0_21 = arith.constant 0 : index
    %c0_22 = arith.constant 0 : index
    %46 = vector.load %arg9[%c0_21, %c0_22] : memref<1x9xf32, #tpu.memory_space<vmem>>, vector<1x9xf32>
    %47 = vector.broadcast %46 : vector<1x9xf32> to vector<8x9xf32>
    %48 = arith.addf %45, %47 : vector<8x9xf32>
    %c0_23 = arith.constant 0 : index
    %c0_24 = arith.constant 0 : index
    %49 = vector.load %arg10[%c0_23, %c0_24] : memref<8x9xf32, #tpu.memory_space<vmem>>, vector<8x9xf32>
    tpu.vector_store %arg10[%c0_23, %c0_24], %48 {strides = array<i32>} : memref<8x9xf32, #tpu.memory_space<vmem>>, vector<8x9xf32>,
    return
  }
  func.func @transform_0(%arg0: i32) -> (i32, i32) {
    %c0_i32 = arith.constant 0 : i32
    %c0_i32_0 = arith.constant 0 : i32
    return %arg0, %c0_i32 : i32, i32
  }
  func.func @transform_1(%arg0: i32) -> (i32, i32) {
    %c0_i32 = arith.constant 0 : i32
    %c0_i32_0 = arith.constant 0 : i32
    %c0_i32_1 = arith.constant 0 : i32
    return %c0_i32, %c0_i32_0 : i32, i32
  }
  func.func @transform_2(%arg0: i32) -> (i32, i32) {
    %c0_i32 = arith.constant 0 : i32
    %c0_i32_0 = arith.constant 0 : i32
    %c0_i32_1 = arith.constant 0 : i32
    return %c0_i32, %c0_i32_0 : i32, i32
  }
  func.func @transform_3(%arg0: i32) -> (i32, i32) {
    %c0_i32 = arith.constant 0 : i32
    %c0_i32_0 = arith.constant 0 : i32
    %c0_i32_1 = arith.constant 0 : i32
    return %c0_i32, %c0_i32_0 : i32, i32
  }
  func.func @transform_4(%arg0: i32) -> (i32, i32) {
    %c0_i32 = arith.constant 0 : i32
    %c0_i32_0 = arith.constant 0 : i32
    %c0_i32_1 = arith.constant 0 : i32
    return %c0_i32, %c0_i32_0 : i32, i32
  }
  func.func @transform_5(%arg0: i32) -> (i32, i32) {
    %c0_i32 = arith.constant 0 : i32
    %c0_i32_0 = arith.constant 0 : i32
    %c0_i32_1 = arith.constant 0 : i32
    return %c0_i32, %c0_i32_0 : i32, i32
  }
  func.func @transform_6(%arg0: i32) -> (i32, i32) {
    %c0_i32 = arith.constant 0 : i32
    %c0_i32_0 = arith.constant 0 : i32
    %c0_i32_1 = arith.constant 0 : i32
    return %c0_i32, %c0_i32_0 : i32, i32
  }
  func.func @transform_7(%arg0: i32) -> (i32, i32) {
    %c0_i32 = arith.constant 0 : i32
    %c0_i32_0 = arith.constant 0 : i32
    %c0_i32_1 = arith.constant 0 : i32
    return %c0_i32, %c0_i32_0 : i32, i32
  }
  func.func @transform_8(%arg0: i32) -> (i32, i32) {
    %c0_i32 = arith.constant 0 : i32
    %c0_i32_0 = arith.constant 0 : i32
    %c0_i32_1 = arith.constant 0 : i32
    return %c0_i32, %c0_i32_0 : i32, i32
  }
  func.func @transform_9(%arg0: i32) -> (i32, i32) {
    %c0_i32 = arith.constant 0 : i32
    %c0_i32_0 = arith.constant 0 : i32
    return %arg0, %c0_i32 : i32, i32
  }
}

</mosaic_0001>

<llo_original>
// kernel: tpu_custom_call.1
$region0: #{tpu_custom_call.1}
  #allocation0 [shape = 'u32[]', space=smem, size = 0x4, offset = 0x4, fixed_abs, tag = 'smem constant byte address 0x4 - core index']
  #allocation1 [shape = 'u32[144,128]{1,0:T(1,128)}', space=vmem, size = 0x12000, scoped, tag = 'internal scratch']
  %s0 = inlined_call_operand.vmem [shape: f32[8,2], index: 0, kind: input, shape index: {}]
  %s1 = inlined_call_operand.vmem [shape: f32[2,64], index: 1, kind: input, shape index: {}]
  %s2 = inlined_call_operand.vmem [shape: f32[1,64], index: 2, kind: input, shape index: {}]
  %s3 = inlined_call_operand.vmem [shape: bf16[64,128], index: 3, kind: input, shape index: {}]
  %s4 = inlined_call_operand.vmem [shape: f32[1,128], index: 4, kind: input, shape index: {}]
  %s5 = inlined_call_operand.vmem [shape: bf16[128,512], index: 5, kind: input, shape index: {}]
  %s6 = inlined_call_operand.vmem [shape: f32[1,512], index: 6, kind: input, shape index: {}]
  %s7 = inlined_call_operand.vmem [shape: bf16[512,9], index: 7, kind: input, shape index: {}]
  %s8 = inlined_call_operand.vmem [shape: f32[1,9], index: 8, kind: input, shape index: {}]
  %s9 = inlined_call_operand.hbm [shape: f32[8,9], index: 9, kind: output, shape index: {}]
  %s10 = sld [smem:[#allocation0]]
  $region46: #{tpu_custom_call.1} parent=0
    _
  %s12 = ssub.s32 1, %s10
  %s13 = scalar_select 0, %s12, %s10
  $region1: #{tpu_custom_call.1} parent=0
    #allocation2 [shape = 'u8[4096]{0}', space=vmem, size = 0x1000, scoped, tag = 'output window, operand 0, single buffered']
    #allocation3 [shape = 's32[1]{0}', space=sflag, size = 0x4, scoped, tag = 'scoped memory for tpu_custom_call.1']
    %14 = vsyncpa [#allocation3], 0
    // Predicated region
    $region2: #{tpu_custom_call.1} parent=1 // pred_check
      _
    $region3: #{tpu_custom_call.1} parent=1 // pred_check_branch
      %16 = sbr.rel (0) target = $region5
    $region4: #{tpu_custom_call.1} parent=1 // pred_region
      _
    $region5: #{tpu_custom_call.1} parent=1 // pred_fallthru
      _
    // Predicated region
    $region6: #{tpu_custom_call.1} parent=1 // pred_check
      _
    $region7: #{tpu_custom_call.1} parent=1 // pred_check_branch
      %18 = sbr.rel (0) target = $region9
    $region8: #{tpu_custom_call.1} parent=1 // pred_region
      _
    $region9: #{tpu_custom_call.1} parent=1 // pred_fallthru
      _
    // Predicated region
    $region10: #{tpu_custom_call.1} parent=1 // pred_check
      _
    $region11: #{tpu_custom_call.1} parent=1 // pred_check_branch
      %20 = sbr.rel (0) target = $region13
    $region12: #{tpu_custom_call.1} parent=1 // pred_region
      _
    $region13: #{tpu_custom_call.1} parent=1 // pred_fallthru
      _
    // Predicated region
    $region14: #{tpu_custom_call.1} parent=1 // pred_check
      _
    $region15: #{tpu_custom_call.1} parent=1 // pred_check_branch
      %22 = sbr.rel (0) target = $region17
    $region16: #{tpu_custom_call.1} parent=1 // pred_region
      _
    $region17: #{tpu_custom_call.1} parent=1 // pred_fallthru
      _
    // Predicated region
    $region18: #{tpu_custom_call.1} parent=1 // pred_check
      _
    $region19: #{tpu_custom_call.1} parent=1 // pred_check_branch
      %24 = sbr.rel (0) target = $region21
    $region20: #{tpu_custom_call.1} parent=1 // pred_region
      _
    $region21: #{tpu_custom_call.1} parent=1 // pred_fallthru
      _
    // Predicated region
    $region22: #{tpu_custom_call.1} parent=1 // pred_check
      _
    $region23: #{tpu_custom_call.1} parent=1 // pred_check_branch
      %26 = sbr.rel (0) target = $region25
    $region24: #{tpu_custom_call.1} parent=1 // pred_region
      _
    $region25: #{tpu_custom_call.1} parent=1 // pred_fallthru
      _
    // Predicated region
    $region26: #{tpu_custom_call.1} parent=1 // pred_check
      _
    $region27: #{tpu_custom_call.1} parent=1 // pred_check_branch
      %28 = sbr.rel (0) target = $region29
    $region28: #{tpu_custom_call.1} parent=1 // pred_region
      _
    $region29: #{tpu_custom_call.1} parent=1 // pred_fallthru
      _
    // Predicated region
    $region30: #{tpu_custom_call.1} parent=1 // pred_check
      _
    $region31: #{tpu_custom_call.1} parent=1 // pred_check_branch
      %30 = sbr.rel (0) target = $region33
    $region32: #{tpu_custom_call.1} parent=1 // pred_region
      _
    $region33: #{tpu_custom_call.1} parent=1 // pred_fallthru
      _
    // Predicated region
    $region34: #{tpu_custom_call.1} parent=1 // pred_check
      _
    $region35: #{tpu_custom_call.1} parent=1 // pred_check_branch
      %32 = sbr.rel (0) target = $region37
    $region36: #{tpu_custom_call.1} parent=1 // pred_region
      _
    $region37: #{tpu_custom_call.1} parent=1 // pred_fallthru
      _
    %v34 = vld [vmem:[%s0] sm:$0xff]
    %vm35 = vcmask 15360
    %v36 = vsel %vm35, %v34, -inf
    %37 = vmax.xlane.f32.xlu0 %v36
    %v38 = vpop.xlane.xlu0 %37
    %v39 = vsub.f32 %v34, %v38
    %v40 = vmul.f32 %v39, 1.442695
    %v41 = vpow.pop %v40
    %v42 = vsel %vm35, %v41, 0.0
    %43 = vadd.xlane.f32.xlu0 %v42
    %v44 = vpop.xlane.xlu0 %43
    %v45 = vrcp.pop %v44
    %v46 = vmul.f32 %v41, %v45
    %v47 = vld [vmem:[%s1] sm:$0x3]
    %49 = vset.pattern.permute.xlu0 0
    %50 = vperm.xlu0 %49, %v46
    %v51 = vpop.permute.xlu0 %50
    %v53 = vlaneseq
    %v54 = vshrl.u32 %v53, 7
    %v55 = vsub.s32 0, %v54
    %v56 = vrot.slane %v47, %v55
    %v57 = vmul.f32 %v51, %v56
    %58 = vset.pattern.permute.xlu0 1
    %59 = vperm.xlu0 %58, %v46
    %v60 = vpop.permute.xlu0 %59
    %v62 = vlaneseq
    %v63 = vshrl.u32 %v62, 7
    %v64 = vsub.s32 1, %v63
    %v65 = vrot.slane %v47, %v64
    %v66 = vmul.f32 %v60, %v65
    %v67 = vadd.f32 %v57, %v66
    %v68 = vld [vmem:[%s2] sm:$0x1]
    %v70 = vlaneseq
    %v71 = vshrl.u32 %v70, 7
    %v72 = vsub.s32 0, %v71
    %v73 = vrot.slane %v68, %v72
    %v75 = vadd.f32 %v67, %v73
    %v76 = vmax.f32 %v75, 0.0
    %v77 = vpack.c.bf16 %v76, %v76
    %v78 = vld [vmem:[%s3] sm:$0xf]
    %v79 = vld [vmem:[%s3 + $0x4] sm:$0xf]
    %v80 = vld [vmem:[%s3 + $0x8] sm:$0xf]
    %v81 = vld [vmem:[%s3 + $0xc] sm:$0xf]
    %v82 = vld [vmem:[%s3 + $0x10] sm:$0xf]
    %v83 = vld [vmem:[%s3 + $0x14] sm:$0xf]
    %v84 = vld [vmem:[%s3 + $0x18] sm:$0xf]
    %v85 = vld [vmem:[%s3 + $0x1c] sm:$0xf]
    %v86 = vld [vmem:[%s4] sm:$0x1]
    %v88 = vlaneseq
    %v89 = vshrl.u32 %v88, 7
    %v90 = vsub.s32 0, %v89
    %v91 = vrot.slane %v86, %v90
    %v101 = vunpack.c.l.b16 %v78
    %v102 = vunpack.c.l.b16 %v79
    %v103 = vunpack.c.l.b16 %v80
    %v104 = vunpack.c.l.b16 %v81
    %v105 = vunpack.c.l.b16 %v82
    %v106 = vunpack.c.l.b16 %v83
    %v107 = vunpack.c.l.b16 %v84
    %v108 = vunpack.c.l.b16 %v85
    %v109 = vpack.c.b16 %v102, %v101
    %v110 = vpack.c.b16 %v104, %v103
    %v111 = vpack.c.b16 %v106, %v105
    %v112 = vpack.c.b16 %v108, %v107
    %vm117 = vcmask 523264
    %v119 = vsel %vm117, %v77, 0
    %121 = vmatprep.subr.bf16.mxu0 0
    %122 = vmatpush1.bf16.msra.mxu0 0
    %123 = vmatprep.subr.bf16.mxu0 0
    %124 = vmatpush1.bf16.msra.mxu0 0
    %125 = vmatprep.subr.bf16.mxu0 0
    %126 = vmatpush1.bf16.msra.mxu0 0
    %127 = vmatprep.subr.bf16.mxu0 0
    %128 = vmatpush1.bf16.msra.mxu0 0
    %129 = vmatprep.subr.bf16.mxu0 0
    %130 = vmatpush1.bf16.msra.mxu0 %v112
    %131 = vmatprep.subr.bf16.mxu0 0
    %132 = vmatpush1.bf16.msra.mxu0 %v111
    %133 = vmatprep.subr.bf16.mxu0 0
    %134 = vmatpush1.bf16.msra.mxu0 %v110
    %135 = vmatprep.subr.bf16.mxu0 0
    %136 = vmatpush1.bf16.msra.mxu0 %v109
    %137 = vmatprep.subr.bf16.mxu0 0
    %138 = vmatpush2.bf16.msra.mxu0 0
    %139 = vmatprep.subr.bf16.mxu0 0
    %140 = vmatpush2.bf16.msra.mxu0 0
    %141 = vmatprep.subr.bf16.mxu0 0
    %142 = vmatpush2.bf16.msra.mxu0 0
    %143 = vmatprep.subr.bf16.mxu0 0
    %144 = vmatpush2.bf16.msra.mxu0 0
    %145 = vmatprep.subr.bf16.mxu0 0
    %146 = vmatpush2.bf16.msra.mxu0 0
    %147 = vmatprep.subr.bf16.mxu0 0
    %148 = vmatpush2.bf16.msra.mxu0 0
    %149 = vmatprep.subr.bf16.mxu0 0
    %150 = vmatpush2.bf16.msra.mxu0 0
    %151 = vmatprep.subr.bf16.mxu0 0
    %152 = vmatpush2.bf16.msra.mxu0 0
    %153 = vmatprep.mubr.bf16.mxu0 0
    %154 = vmatmul.mubr.bf16.gmra.mxu0 %v119
    %v155 = vpop.f32.mrf.mxu0
    %v156 = vadd.f32 %v91, %v155
    %v157 = vpop.f32.mrf.mxu0
    %v158 = vpop.f32.mrf.mxu0
    %v159 = vpop.f32.mrf.mxu0
    %160 = vdwg.mxu0
    %v161 = vtanh.pop %v156
    %v162 = vpack.c.bf16 %v161, %v161
    %v163 = vld [vmem:[%s5] sm:$0xff]
    %v164 = vld [vmem:[%s5 + $0x8] sm:$0xff]
    %v165 = vld [vmem:[%s5 + $0x10] sm:$0xff]
    %v166 = vld [vmem:[%s5 + $0x18] sm:$0xff]
    %v167 = vld [vmem:[%s5 + $0x20] sm:$0xff]
    %v168 = vld [vmem:[%s5 + $0x28] sm:$0xff]
    %v169 = vld [vmem:[%s5 + $0x30] sm:$0xff]
    %v170 = vld [vmem:[%s5 + $0x38] sm:$0xff]
    %v171 = vld [vmem:[%s5 + $0x40] sm:$0xff]
    %v172 = vld [vmem:[%s5 + $0x48] sm:$0xff]
    %v173 = vld [vmem:[%s5 + $0x50] sm:$0xff]
    %v174 = vld [vmem:[%s5 + $0x58] sm:$0xff]
    %v175 = vld [vmem:[%s5 + $0x60] sm:$0xff]
    %v176 = vld [vmem:[%s5 + $0x68] sm:$0xff]
    %v177 = vld [vmem:[%s5 + $0x70] sm:$0xff]
    %v178 = vld [vmem:[%s5 + $0x78] sm:$0xff]
    %v179 = vld [vmem:[%s5 + $0x80] sm:$0xff]
    %v180 = vld [vmem:[%s5 + $0x88] sm:$0xff]
    %v181 = vld [vmem:[%s5 + $0x90] sm:$0xff]
    %v182 = vld [vmem:[%s5 + $0x98] sm:$0xff]
    %v183 = vld [vmem:[%s5 + $0xa0] sm:$0xff]
    %v184 = vld [vmem:[%s5 + $0xa8] sm:$0xff]
    %v185 = vld [vmem:[%s5 + $0xb0] sm:$0xff]
    %v186 = vld [vmem:[%s5 + $0xb8] sm:$0xff]
    %v187 = vld [vmem:[%s5 + $0xc0] sm:$0xff]
    %v188 = vld [vmem:[%s5 + $0xc8] sm:$0xff]
    %v189 = vld [vmem:[%s5 + $0xd0] sm:$0xff]
    %v190 = vld [vmem:[%s5 + $0xd8] sm:$0xff]
    %v191 = vld [vmem:[%s5 + $0xe0] sm:$0xff]
    %v192 = vld [vmem:[%s5 + $0xe8] sm:$0xff]
    %v193 = vld [vmem:[%s5 + $0xf0] sm:$0xff]
    %v194 = vld [vmem:[%s5 + $0xf8] sm:$0xff]
    %v195 = vld [vmem:[%s6] sm:$0xf]
    %v197 = vlaneseq
    %v198 = vshrl.u32 %v197, 7
    %v199 = vsub.s32 0, %v198
    %v200 = vrot.slane %v195, %v199
    %v201 = vlaneseq
    %v202 = vshrl.u32 %v201, 7
    %v203 = vsub.s32 1, %v202
    %v204 = vrot.slane %v195, %v203
    %v205 = vlaneseq
    %v206 = vshrl.u32 %v205, 7
    %v207 = vsub.s32 2, %v206
    %v208 = vrot.slane %v195, %v207
    %v209 = vlaneseq
    %v210 = vshrl.u32 %v209, 7
    %v211 = vsub.s32 3, %v210
    %v212 = vrot.slane %v195, %v211
    %v249 = vunpack.c.l.b16 %v163
    %v250 = vunpack.c.h.b16 %v163
    %v251 = vunpack.c.l.b16 %v164
    %v252 = vunpack.c.h.b16 %v164
    %v253 = vunpack.c.l.b16 %v165
    %v254 = vunpack.c.h.b16 %v165
    %v255 = vunpack.c.l.b16 %v166
    %v256 = vunpack.c.h.b16 %v166
    %v257 = vunpack.c.l.b16 %v167
    %v258 = vunpack.c.h.b16 %v167
    %v259 = vunpack.c.l.b16 %v168
    %v260 = vunpack.c.h.b16 %v168
    %v261 = vunpack.c.l.b16 %v169
    %v262 = vunpack.c.h.b16 %v169
    %v263 = vunpack.c.l.b16 %v170
    %v264 = vunpack.c.h.b16 %v170
    %v265 = vunpack.c.l.b16 %v171
    %v266 = vunpack.c.h.b16 %v171
    %v267 = vunpack.c.l.b16 %v172
    %v268 = vunpack.c.h.b16 %v172
    %v269 = vunpack.c.l.b16 %v173
    %v270 = vunpack.c.h.b16 %v173
    %v271 = vunpack.c.l.b16 %v174
    %v272 = vunpack.c.h.b16 %v174
    %v273 = vunpack.c.l.b16 %v175
    %v274 = vunpack.c.h.b16 %v175
    %v275 = vunpack.c.l.b16 %v176
    %v276 = vunpack.c.h.b16 %v176
    %v277 = vunpack.c.l.b16 %v177
    %v278 = vunpack.c.h.b16 %v177
    %v279 = vunpack.c.l.b16 %v178
    %v280 = vunpack.c.h.b16 %v178
    %v281 = vunpack.c.l.b16 %v179
    %v282 = vunpack.c.h.b16 %v179
    %v283 = vunpack.c.l.b16 %v180
    %v284 = vunpack.c.h.b16 %v180
    %v285 = vunpack.c.l.b16 %v181
    %v286 = vunpack.c.h.b16 %v181
    %v287 = vunpack.c.l.b16 %v182
    %v288 = vunpack.c.h.b16 %v182
    %v289 = vunpack.c.l.b16 %v183
    %v290 = vunpack.c.h.b16 %v183
    %v291 = vunpack.c.l.b16 %v184
    %v292 = vunpack.c.h.b16 %v184
    %v293 = vunpack.c.l.b16 %v185
    %v294 = vunpack.c.h.b16 %v185
    %v295 = vunpack.c.l.b16 %v186
    %v296 = vunpack.c.h.b16 %v186
    %v297 = vunpack.c.l.b16 %v187
    %v298 = vunpack.c.h.b16 %v187
    %v299 = vunpack.c.l.b16 %v188
    %v300 = vunpack.c.h.b16 %v188
    %v301 = vunpack.c.l.b16 %v189
    %v302 = vunpack.c.h.b16 %v189
    %v303 = vunpack.c.l.b16 %v190
    %v304 = vunpack.c.h.b16 %v190
    %v305 = vunpack.c.l.b16 %v191
    %v306 = vunpack.c.h.b16 %v191
    %v307 = vunpack.c.l.b16 %v192
    %v308 = vunpack.c.h.b16 %v192
    %v309 = vunpack.c.l.b16 %v193
    %v310 = vunpack.c.h.b16 %v193
    %v311 = vunpack.c.l.b16 %v194
    %v312 = vunpack.c.h.b16 %v194
    %v313 = vpack.c.b16 %v253, %v249
    %v314 = vpack.c.b16 %v254, %v250
    %v315 = vpack.c.b16 %v255, %v251
    %v316 = vpack.c.b16 %v256, %v252
    %v317 = vpack.c.b16 %v261, %v257
    %v318 = vpack.c.b16 %v262, %v258
    %v319 = vpack.c.b16 %v263, %v259
    %v320 = vpack.c.b16 %v264, %v260
    %v321 = vpack.c.b16 %v269, %v265
    %v322 = vpack.c.b16 %v270, %v266
    %v323 = vpack.c.b16 %v271, %v267
    %v324 = vpack.c.b16 %v272, %v268
    %v325 = vpack.c.b16 %v277, %v273
    %v326 = vpack.c.b16 %v278, %v274
    %v327 = vpack.c.b16 %v279, %v275
    %v328 = vpack.c.b16 %v280, %v276
    %v329 = vpack.c.b16 %v285, %v281
    %v330 = vpack.c.b16 %v286, %v282
    %v331 = vpack.c.b16 %v287, %v283
    %v332 = vpack.c.b16 %v288, %v284
    %v333 = vpack.c.b16 %v293, %v289
    %v334 = vpack.c.b16 %v294, %v290
    %v335 = vpack.c.b16 %v295, %v291
    %v336 = vpack.c.b16 %v296, %v292
    %v337 = vpack.c.b16 %v301, %v297
    %v338 = vpack.c.b16 %v302, %v298
    %v339 = vpack.c.b16 %v303, %v299
    %v340 = vpack.c.b16 %v304, %v300
    %v341 = vpack.c.b16 %v309, %v305
    %v342 = vpack.c.b16 %v310, %v306
    %v343 = vpack.c.b16 %v311, %v307
    %v344 = vpack.c.b16 %v312, %v308
    %377 = vmatprep.subr.bf16.mxu0 %v342
    %378 = vmatpush1.bf16.msra.mxu0 %v341
    %379 = vmatprep.subr.bf16.mxu0 %v338
    %380 = vmatpush1.bf16.msra.mxu0 %v337
    %381 = vmatprep.subr.bf16.mxu0 %v334
    %382 = vmatpush1.bf16.msra.mxu0 %v333
    %383 = vmatprep.subr.bf16.mxu0 %v330
    %384 = vmatpush1.bf16.msra.mxu0 %v329
    %385 = vmatprep.subr.bf16.mxu0 %v326
    %386 = vmatpush1.bf16.msra.mxu0 %v325
    %387 = vmatprep.subr.bf16.mxu0 %v322
    %388 = vmatpush1.bf16.msra.mxu0 %v321
    %389 = vmatprep.subr.bf16.mxu0 %v318
    %390 = vmatpush1.bf16.msra.mxu0 %v317
    %391 = vmatprep.subr.bf16.mxu0 %v314
    %392 = vmatpush1.bf16.msra.mxu0 %v313
    %393 = vmatprep.subr.bf16.mxu0 0
    %394 = vmatpush2.bf16.msra.mxu0 0
    %395 = vmatprep.subr.bf16.mxu0 0
    %396 = vmatpush2.bf16.msra.mxu0 0
    %397 = vmatprep.subr.bf16.mxu0 0
    %398 = vmatpush2.bf16.msra.mxu0 0
    %399 = vmatprep.subr.bf16.mxu0 0
    %400 = vmatpush2.bf16.msra.mxu0 0
    %401 = vmatprep.subr.bf16.mxu0 0
    %402 = vmatpush2.bf16.msra.mxu0 0
    %403 = vmatprep.subr.bf16.mxu0 0
    %404 = vmatpush2.bf16.msra.mxu0 0
    %405 = vmatprep.subr.bf16.mxu0 0
    %406 = vmatpush2.bf16.msra.mxu0 0
    %407 = vmatprep.subr.bf16.mxu0 0
    %408 = vmatpush2.bf16.msra.mxu0 0
    %409 = vmatprep.mubr.bf16.mxu0 0
    %410 = vmatmul.mubr.bf16.gmra.mxu0 %v162
    %v411 = vpop.f32.mrf.mxu0
    %v412 = vadd.f32 %v200, %v411
    %v413 = vpop.f32.mrf.mxu0
    %v414 = vadd.f32 %v204, %v413
    %v415 = vpop.f32.mrf.mxu0
    %v416 = vpop.f32.mrf.mxu0
    %417 = vdwg.mxu0
    %418 = vmatprep.subr.bf16.mxu0 %v344
    %419 = vmatpush1.bf16.msra.mxu0 %v343
    %420 = vmatprep.subr.bf16.mxu0 %v340
    %421 = vmatpush1.bf16.msra.mxu0 %v339
    %422 = vmatprep.subr.bf16.mxu0 %v336
    %423 = vmatpush1.bf16.msra.mxu0 %v335
    %424 = vmatprep.subr.bf16.mxu0 %v332
    %425 = vmatpush1.bf16.msra.mxu0 %v331
    %426 = vmatprep.subr.bf16.mxu0 %v328
    %427 = vmatpush1.bf16.msra.mxu0 %v327
    %428 = vmatprep.subr.bf16.mxu0 %v324
    %429 = vmatpush1.bf16.msra.mxu0 %v323
    %430 = vmatprep.subr.bf16.mxu0 %v320
    %431 = vmatpush1.bf16.msra.mxu0 %v319
    %432 = vmatprep.subr.bf16.mxu0 %v316
    %433 = vmatpush1.bf16.msra.mxu0 %v315
    %434 = vmatprep.subr.bf16.mxu0 0
    %435 = vmatpush2.bf16.msra.mxu0 0
    %436 = vmatprep.subr.bf16.mxu0 0
    %437 = vmatpush2.bf16.msra.mxu0 0
    %438 = vmatprep.subr.bf16.mxu0 0
    %439 = vmatpush2.bf16.msra.mxu0 0
    %440 = vmatprep.subr.bf16.mxu0 0
    %441 = vmatpush2.bf16.msra.mxu0 0
    %442 = vmatprep.subr.bf16.mxu0 0
    %443 = vmatpush2.bf16.msra.mxu0 0
    %444 = vmatprep.subr.bf16.mxu0 0
    %445 = vmatpush2.bf16.msra.mxu0 0
    %446 = vmatprep.subr.bf16.mxu0 0
    %447 = vmatpush2.bf16.msra.mxu0 0
    %448 = vmatprep.subr.bf16.mxu0 0
    %449 = vmatpush2.bf16.msra.mxu0 0
    %450 = vmatprep.mubr.bf16.mxu0 0
    %451 = vmatmul.mubr.bf16.gmra.mxu0 %v162
    %v452 = vpop.f32.mrf.mxu0
    %v453 = vadd.f32 %v208, %v452
    %v454 = vpop.f32.mrf.mxu0
    %v455 = vadd.f32 %v212, %v454
    %v456 = vpop.f32.mrf.mxu0
    %v457 = vpop.f32.mrf.mxu0
    %458 = vdwg.mxu0
    %v459 = vmax.f32 %v412, 0.0
    %v460 = vmax.f32 %v414, 0.0
    %v461 = vmax.f32 %v453, 0.0
    %v462 = vmax.f32 %v455, 0.0
    %v463 = vpack.c.bf16 %v459, %v459
    %v464 = vpack.c.bf16 %v460, %v460
    %v465 = vpack.c.bf16 %v461, %v461
    %v466 = vpack.c.bf16 %v462, %v462
    %v467 = vld [vmem:[%s7] sm:$0xf]
    %v468 = vld [vmem:[%s7 + $0x4] sm:$0xf]
    %v469 = vld [vmem:[%s7 + $0x8] sm:$0xf]
    %v470 = vld [vmem:[%s7 + $0xc] sm:$0xf]
    %v471 = vld [vmem:[%s7 + $0x10] sm:$0xf]
    %v472 = vld [vmem:[%s7 + $0x14] sm:$0xf]
    %v473 = vld [vmem:[%s7 + $0x18] sm:$0xf]
    %v474 = vld [vmem:[%s7 + $0x1c] sm:$0xf]
    %v475 = vld [vmem:[%s7 + $0x20] sm:$0xf]
    %v476 = vld [vmem:[%s7 + $0x24] sm:$0xf]
    %v477 = vld [vmem:[%s7 + $0x28] sm:$0xf]
    %v478 = vld [vmem:[%s7 + $0x2c] sm:$0xf]
    %v479 = vld [vmem:[%s7 + $0x30] sm:$0xf]
    %v480 = vld [vmem:[%s7 + $0x34] sm:$0xf]
    %v481 = vld [vmem:[%s7 + $0x38] sm:$0xf]
    %v482 = vld [vmem:[%s7 + $0x3c] sm:$0xf]
    %v483 = vld [vmem:[%s7 + $0x40] sm:$0xf]
    %v484 = vld [vmem:[%s7 + $0x44] sm:$0xf]
    %v485 = vld [vmem:[%s7 + $0x48] sm:$0xf]
    %v486 = vld [vmem:[%s7 + $0x4c] sm:$0xf]
    %v487 = vld [vmem:[%s7 + $0x50] sm:$0xf]
    %v488 = vld [vmem:[%s7 + $0x54] sm:$0xf]
    %v489 = vld [vmem:[%s7 + $0x58] sm:$0xf]
    %v490 = vld [vmem:[%s7 + $0x5c] sm:$0xf]
    %v491 = vld [vmem:[%s7 + $0x60] sm:$0xf]
    %v492 = vld [vmem:[%s7 + $0x64] sm:$0xf]
    %v493 = vld [vmem:[%s7 + $0x68] sm:$0xf]
    %v494 = vld [vmem:[%s7 + $0x6c] sm:$0xf]
    %v495 = vld [vmem:[%s7 + $0x70] sm:$0xf]
    %v496 = vld [vmem:[%s7 + $0x74] sm:$0xf]
    %v497 = vld [vmem:[%s7 + $0x78] sm:$0xf]
    %v498 = vld [vmem:[%s7 + $0x7c] sm:$0xf]
    %v499 = vld [vmem:[%s7 + $0x80] sm:$0xf]
    %v500 = vld [vmem:[%s7 + $0x84] sm:$0xf]
    %v501 = vld [vmem:[%s7 + $0x88] sm:$0xf]
    %v502 = vld [vmem:[%s7 + $0x8c] sm:$0xf]
    %v503 = vld [vmem:[%s7 + $0x90] sm:$0xf]
    %v504 = vld [vmem:[%s7 + $0x94] sm:$0xf]
    %v505 = vld [vmem:[%s7 + $0x98] sm:$0xf]
    %v506 = vld [vmem:[%s7 + $0x9c] sm:$0xf]
    %v507 = vld [vmem:[%s7 + $0xa0] sm:$0xf]
    %v508 = vld [vmem:[%s7 + $0xa4] sm:$0xf]
    %v509 = vld [vmem:[%s7 + $0xa8] sm:$0xf]
    %v510 = vld [vmem:[%s7 + $0xac] sm:$0xf]
    %v511 = vld [vmem:[%s7 + $0xb0] sm:$0xf]
    %v512 = vld [vmem:[%s7 + $0xb4] sm:$0xf]
    %v513 = vld [vmem:[%s7 + $0xb8] sm:$0xf]
    %v514 = vld [vmem:[%s7 + $0xbc] sm:$0xf]
    %v515 = vld [vmem:[%s7 + $0xc0] sm:$0xf]
    %v516 = vld [vmem:[%s7 + $0xc4] sm:$0xf]
    %v517 = vld [vmem:[%s7 + $0xc8] sm:$0xf]
    %v518 = vld [vmem:[%s7 + $0xcc] sm:$0xf]
    %v519 = vld [vmem:[%s7 + $0xd0] sm:$0xf]
    %v520 = vld [vmem:[%s7 + $0xd4] sm:$0xf]
    %v521 = vld [vmem:[%s7 + $0xd8] sm:$0xf]
    %v522 = vld [vmem:[%s7 + $0xdc] sm:$0xf]
    %v523 = vld [vmem:[%s7 + $0xe0] sm:$0xf]
    %v524 = vld [vmem:[%s7 + $0xe4] sm:$0xf]
    %v525 = vld [vmem:[%s7 + $0xe8] sm:$0xf]
    %v526 = vld [vmem:[%s7 + $0xec] sm:$0xf]
    %v527 = vld [vmem:[%s7 + $0xf0] sm:$0xf]
    %v528 = vld [vmem:[%s7 + $0xf4] sm:$0xf]
    %v529 = vld [vmem:[%s7 + $0xf8] sm:$0xf]
    %v530 = vld [vmem:[%s7 + $0xfc] sm:$0xf]
    %v531 = vld [vmem:[%s8] sm:$0x1]
    %v533 = vlaneseq
    %v534 = vshrl.u32 %v533, 7
    %v535 = vsub.s32 0, %v534
    %v536 = vrot.slane %v531, %v535
    %v602 = vunpack.c.l.b16 %v467
    %v603 = vunpack.c.l.b16 %v468
    %v604 = vunpack.c.l.b16 %v469
    %v605 = vunpack.c.l.b16 %v470
    %v606 = vunpack.c.l.b16 %v471
    %v607 = vunpack.c.l.b16 %v472
    %v608 = vunpack.c.l.b16 %v473
    %v609 = vunpack.c.l.b16 %v474
    %v610 = vunpack.c.l.b16 %v475
    %v611 = vunpack.c.l.b16 %v476
    %v612 = vunpack.c.l.b16 %v477
    %v613 = vunpack.c.l.b16 %v478
    %v614 = vunpack.c.l.b16 %v479
    %v615 = vunpack.c.l.b16 %v480
    %v616 = vunpack.c.l.b16 %v481
    %v617 = vunpack.c.l.b16 %v482
    %v618 = vunpack.c.l.b16 %v483
    %v619 = vunpack.c.l.b16 %v484
    %v620 = vunpack.c.l.b16 %v485
    %v621 = vunpack.c.l.b16 %v486
    %v622 = vunpack.c.l.b16 %v487
    %v623 = vunpack.c.l.b16 %v488
    %v624 = vunpack.c.l.b16 %v489
    %v625 = vunpack.c.l.b16 %v490
    %v626 = vunpack.c.l.b16 %v491
    %v627 = vunpack.c.l.b16 %v492
    %v628 = vunpack.c.l.b16 %v493
    %v629 = vunpack.c.l.b16 %v494
    %v630 = vunpack.c.l.b16 %v495
    %v631 = vunpack.c.l.b16 %v496
    %v632 = vunpack.c.l.b16 %v497
    %v633 = vunpack.c.l.b16 %v498
    %v634 = vunpack.c.l.b16 %v499
    %v635 = vunpack.c.l.b16 %v500
    %v636 = vunpack.c.l.b16 %v501
    %v637 = vunpack.c.l.b16 %v502
    %v638 = vunpack.c.l.b16 %v503
    %v639 = vunpack.c.l.b16 %v504
    %v640 = vunpack.c.l.b16 %v505
    %v641 = vunpack.c.l.b16 %v506
    %v642 = vunpack.c.l.b16 %v507
    %v643 = vunpack.c.l.b16 %v508
    %v644 = vunpack.c.l.b16 %v509
    %v645 = vunpack.c.l.b16 %v510
    %v646 = vunpack.c.l.b16 %v511
    %v647 = vunpack.c.l.b16 %v512
    %v648 = vunpack.c.l.b16 %v513
    %v649 = vunpack.c.l.b16 %v514
    %v650 = vunpack.c.l.b16 %v515
    %v651 = vunpack.c.l.b16 %v516
    %v652 = vunpack.c.l.b16 %v517
    %v653 = vunpack.c.l.b16 %v518
    %v654 = vunpack.c.l.b16 %v519
    %v655 = vunpack.c.l.b16 %v520
    %v656 = vunpack.c.l.b16 %v521
    %v657 = vunpack.c.l.b16 %v522
    %v658 = vunpack.c.l.b16 %v523
    %v659 = vunpack.c.l.b16 %v524
    %v660 = vunpack.c.l.b16 %v525
    %v661 = vunpack.c.l.b16 %v526
    %v662 = vunpack.c.l.b16 %v527
    %v663 = vunpack.c.l.b16 %v528
    %v664 = vunpack.c.l.b16 %v529
    %v665 = vunpack.c.l.b16 %v530
    %v666 = vpack.c.b16 %v603, %v602
    %v667 = vpack.c.b16 %v605, %v604
    %v668 = vpack.c.b16 %v607, %v606
    %v669 = vpack.c.b16 %v609, %v608
    %v670 = vpack.c.b16 %v611, %v610
    %v671 = vpack.c.b16 %v613, %v612
    %v672 = vpack.c.b16 %v615, %v614
    %v673 = vpack.c.b16 %v617, %v616
    %v674 = vpack.c.b16 %v619, %v618
    %v675 = vpack.c.b16 %v621, %v620
    %v676 = vpack.c.b16 %v623, %v622
    %v677 = vpack.c.b16 %v625, %v624
    %v678 = vpack.c.b16 %v627, %v626
    %v679 = vpack.c.b16 %v629, %v628
    %v680 = vpack.c.b16 %v631, %v630
    %v681 = vpack.c.b16 %v633, %v632
    %v682 = vpack.c.b16 %v635, %v634
    %v683 = vpack.c.b16 %v637, %v636
    %v684 = vpack.c.b16 %v639, %v638
    %v685 = vpack.c.b16 %v641, %v640
    %v686 = vpack.c.b16 %v643, %v642
    %v687 = vpack.c.b16 %v645, %v644
    %v688 = vpack.c.b16 %v647, %v646
    %v689 = vpack.c.b16 %v649, %v648
    %v690 = vpack.c.b16 %v651, %v650
    %v691 = vpack.c.b16 %v653, %v652
    %v692 = vpack.c.b16 %v655, %v654
    %v693 = vpack.c.b16 %v657, %v656
    %v694 = vpack.c.b16 %v659, %v658
    %v695 = vpack.c.b16 %v661, %v660
    %v696 = vpack.c.b16 %v663, %v662
    %v697 = vpack.c.b16 %v665, %v664
    %730 = vmatprep.subr.bf16.mxu0 0
    %731 = vmatpush1.bf16.msra.mxu0 %v673
    %732 = vmatprep.subr.bf16.mxu0 0
    %733 = vmatpush1.bf16.msra.mxu0 %v672
    %734 = vmatprep.subr.bf16.mxu0 0
    %735 = vmatpush1.bf16.msra.mxu0 %v671
    %736 = vmatprep.subr.bf16.mxu0 0
    %737 = vmatpush1.bf16.msra.mxu0 %v670
    %738 = vmatprep.subr.bf16.mxu0 0
    %739 = vmatpush1.bf16.msra.mxu0 %v669
    %740 = vmatprep.subr.bf16.mxu0 0
    %741 = vmatpush1.bf16.msra.mxu0 %v668
    %742 = vmatprep.subr.bf16.mxu0 0
    %743 = vmatpush1.bf16.msra.mxu0 %v667
    %744 = vmatprep.subr.bf16.mxu0 0
    %745 = vmatpush1.bf16.msra.mxu0 %v666
    %746 = vmatprep.subr.bf16.mxu0 0
    %747 = vmatpush2.bf16.msra.mxu0 %v681
    %748 = vmatprep.subr.bf16.mxu0 0
    %749 = vmatpush2.bf16.msra.mxu0 %v680
    %750 = vmatprep.subr.bf16.mxu0 0
    %751 = vmatpush2.bf16.msra.mxu0 %v679
    %752 = vmatprep.subr.bf16.mxu0 0
    %753 = vmatpush2.bf16.msra.mxu0 %v678
    %754 = vmatprep.subr.bf16.mxu0 0
    %755 = vmatpush2.bf16.msra.mxu0 %v677
    %756 = vmatprep.subr.bf16.mxu0 0
    %757 = vmatpush2.bf16.msra.mxu0 %v676
    %758 = vmatprep.subr.bf16.mxu0 0
    %759 = vmatpush2.bf16.msra.mxu0 %v675
    %760 = vmatprep.subr.bf16.mxu0 0
    %761 = vmatpush2.bf16.msra.mxu0 %v674
    %762 = vmatprep.mubr.bf16.mxu0 %v464
    %763 = vmatmul.mubr.bf16.gmra.mxu0 %v463
    %v764 = vpop.f32.mrf.mxu0
    %v765 = vadd.f32 %v536, %v764
    %v766 = vpop.f32.mrf.mxu0
    %v767 = vpop.f32.mrf.mxu0
    %v768 = vpop.f32.mrf.mxu0
    %769 = vdwg.mxu0
    %770 = vmatprep.subr.bf16.mxu0 0
    %771 = vmatpush1.bf16.msra.mxu0 %v689
    %772 = vmatprep.subr.bf16.mxu0 0
    %773 = vmatpush1.bf16.msra.mxu0 %v688
    %774 = vmatprep.subr.bf16.mxu0 0
    %775 = vmatpush1.bf16.msra.mxu0 %v687
    %776 = vmatprep.subr.bf16.mxu0 0
    %777 = vmatpush1.bf16.msra.mxu0 %v686
    %778 = vmatprep.subr.bf16.mxu0 0
    %779 = vmatpush1.bf16.msra.mxu0 %v685
    %780 = vmatprep.subr.bf16.mxu0 0
    %781 = vmatpush1.bf16.msra.mxu0 %v684
    %782 = vmatprep.subr.bf16.mxu0 0
    %783 = vmatpush1.bf16.msra.mxu0 %v683
    %784 = vmatprep.subr.bf16.mxu0 0
    %785 = vmatpush1.bf16.msra.mxu0 %v682
    %786 = vmatprep.subr.bf16.mxu0 0
    %787 = vmatpush2.bf16.msra.mxu0 %v697
    %788 = vmatprep.subr.bf16.mxu0 0
    %789 = vmatpush2.bf16.msra.mxu0 %v696
    %790 = vmatprep.subr.bf16.mxu0 0
    %791 = vmatpush2.bf16.msra.mxu0 %v695
    %792 = vmatprep.subr.bf16.mxu0 0
    %793 = vmatpush2.bf16.msra.mxu0 %v694
    %794 = vmatprep.subr.bf16.mxu0 0
    %795 = vmatpush2.bf16.msra.mxu0 %v693
    %796 = vmatprep.subr.bf16.mxu0 0
    %797 = vmatpush2.bf16.msra.mxu0 %v692
    %798 = vmatprep.subr.bf16.mxu0 0
    %799 = vmatpush2.bf16.msra.mxu0 %v691
    %800 = vmatprep.subr.bf16.mxu0 0
    %801 = vmatpush2.bf16.msra.mxu0 %v690
    %802 = vmatprep.mubr.bf16.mxu0 %v466
    %803 = vmatmul.mubr.bf16.gmra.mxu0 %v465
    %v804 = vpop.f32.mrf.mxu0
    %v805 = vadd.f32 %v765, %v804
    %v806 = vpop.f32.mrf.mxu0
    %v807 = vpop.f32.mrf.mxu0
    %v808 = vpop.f32.mrf.mxu0
    %809 = vdwg.mxu0
    %vm810 = vcmask 72704
    %811 = vst.msk [vmem:[#allocation2] sm:$0xff] %vm810, %v805
    // Predicated region
    $region38: #{tpu_custom_call.1} parent=1 // pred_check
      _
    $region39: #{tpu_custom_call.1} parent=1 // pred_check_branch
      %813 = sbr.rel (0) target = $region41
    $region40: #{tpu_custom_call.1} parent=1 // pred_region
      %s815 = ssub.s32 128, 128
      %816 = vsyncadd [#allocation3], %s815
      %s818 = sshll.u32 [#allocation2], 4
      %s819 = int_to_ptr.vmem [resolvable:$true] %s818
      %821 = dma.vmem_to_hbm [thread:$0]  %s819, 128, %s9, [#allocation3]
    $region41: #{tpu_custom_call.1} parent=1 // pred_fallthru
      _
    // Predicated region
    $region42: #{tpu_custom_call.1} parent=1 // pred_check
      _
    $region43: #{tpu_custom_call.1} parent=1 // pred_check_branch
      %823 = sbr.rel (0) target = $region45
    $region44: #{tpu_custom_call.1} parent=1 // pred_region
      %824 = dma.done [#allocation3], 128
    $region45: #{tpu_custom_call.1} parent=1 // pred_fallthru
      _
    %825 = vsyncpa [#allocation3], 1

</llo_original>
